<compile_context>
chip_gen: v7x
topology: tpu7x:2x2x1
jax: 0.10.0
libtpu: 0.0.40
codegen_flags: <defaults>
</compile_context>

<pallas_src>
import functools

import jax
import jax.numpy as jnp
from jax.experimental import pallas as pl
from jax.experimental.pallas import tpu as pltpu

_LANE = 128
_SUBLANE = 8


def _round_up(x, m):
    return ((x + m - 1) // m) * m


def _pad2d(a, rows, cols):
    r, c = a.shape
    return jnp.pad(a, ((0, rows - r), (0, cols - c)))


# ----------------------------------------------------------------------------
# Fused kernel: encoder -> sample -> decoder for one batch tile.
# ----------------------------------------------------------------------------
def _fused_translator_kernel(x_ref, eps_ref,
                             w1_ref, b1_ref,
                             wmv_ref, bmv_ref,
                             w3_ref, b3_ref,
                             w4_ref, b4_ref,
                             out_ref):
    # encoder hidden: Linear -> ReLU
    h = jnp.dot(x_ref[...], w1_ref[...], preferred_element_type=jnp.float32)
    h = jnp.maximum(h + b1_ref[...], 0.0)

    # mean / log_var from one packed (H, 2*Lp) matmul, sliced in-register.
    mv = jnp.dot(h, wmv_ref[...], preferred_element_type=jnp.float32) + bmv_ref[...]
    lp = mv.shape[-1] // 2
    mean, log_var = mv[:, :lp], mv[:, lp:]

    # reparameterization: z = eps * exp(0.5*log_var) + mean (exp -> EUP, mul/add -> VPU,
    # both free filler under the MXU-bound regime; kept in-kernel, not in the wrapper).
    z = eps_ref[...] * jnp.exp(0.5 * log_var) + mean

    # decoder: Linear -> ReLU -> Linear
    h2 = jnp.dot(z, w3_ref[...], preferred_element_type=jnp.float32)
    h2 = jnp.maximum(h2 + b3_ref[...], 0.0)
    out_ref[...] = jnp.dot(h2, w4_ref[...], preferred_element_type=jnp.float32) + b4_ref[...]


# ----------------------------------------------------------------------------
# Packing: pad every feature dim to a lane multiple; fuse mean/log_var weights.
# Zero padding is exact: padded K-rows contribute 0 products, padded log_var
# columns give std=1 but are multiplied by eps=0 and by zero rows of w3.
# ----------------------------------------------------------------------------
def _pack_params(p):
    d_in, hidden = p["w1"].shape
    latent = p["wm"].shape[1]
    d_out = p["w4"].shape[1]
    d_in_p = _round_up(d_in, _LANE)
    h_p = _round_up(hidden, _LANE)
    l_p = _round_up(latent, _LANE)
    d_out_p = _round_up(d_out, _LANE)

    packed = {
        "w1": _pad2d(p["w1"], d_in_p, h_p), "b1": _pad2d(p["b1"], 1, h_p),
        "wmv": jnp.concatenate(
            [_pad2d(p["wm"], h_p, l_p), _pad2d(p["wv"], h_p, l_p)], axis=1),
        "bmv": jnp.concatenate(
            [_pad2d(p["bm"], 1, l_p), _pad2d(p["bv"], 1, l_p)], axis=1),
        "w3": _pad2d(p["w3"], l_p, h_p), "b3": _pad2d(p["b3"], 1, h_p),
        "w4": _pad2d(p["w4"], h_p, d_out_p), "b4": _pad2d(p["b4"], 1, d_out_p),
    }
    dims = (d_in, latent, d_out, d_in_p, h_p, l_p, d_out_p)
    return packed, dims


# ----------------------------------------------------------------------------
# Forward wrapper: forward(x) = decoder(sample(encoder(x)))
# ----------------------------------------------------------------------------
@functools.partial(jax.jit, static_argnames=("bm_max",))
def domain_translator_forward(x, eps, params, *, bm_max=256):
    pk, (d_in, latent, d_out, d_in_p, h_p, l_p, d_out_p) = _pack_params(params)
    B = x.shape[0]

    # Batch tile: one big tile for small batches, bm_max-row tiles otherwise.
    # Padding removes any B % bm divisibility requirement.
    bm = min(_round_up(B, _SUBLANE), bm_max)
    b_pad = _round_up(B, bm)
    grid = (b_pad // bm,)

    x_p = jnp.pad(x, ((0, b_pad - B), (0, d_in_p - d_in)))
    eps_p = jnp.pad(eps, ((0, b_pad - B), (0, l_p - latent)))

    # Weights stay resident in VMEM (whole array, no pipelining / double buffering).
    wspec = pl.BlockSpec(memory_space=pltpu.MemorySpace.VMEM)

    # VMEM budget: resident weights + double-buffered batch tiles + activations.
    weight_bytes = 4 * sum(int(v.size) for v in pk.values())
    tile_bytes = 4 * 2 * bm * (d_in_p + l_p + d_out_p)   # x/eps/out, 2 buffers each
    act_bytes = 4 * bm * (2 * h_p + 3 * l_p)             # h, mv, z, h2 (rough)
    vmem_limit = int(min(max(2 * (weight_bytes + tile_bytes + act_bytes),
                             32 * 1024 * 1024),
                         128 * 1024 * 1024))

    out = pl.pallas_call(
        _fused_translator_kernel,
        out_shape=jax.ShapeDtypeStruct((b_pad, d_out_p), jnp.float32),
        grid_spec=pltpu.PrefetchScalarGridSpec(
            num_scalar_prefetch=0,
            grid=grid,
            in_specs=[
                pl.BlockSpec((bm, d_in_p), lambda i: (i, 0)),   # x tile
                pl.BlockSpec((bm, l_p), lambda i: (i, 0)),      # eps tile
                wspec, wspec,                                   # w1,  b1
                wspec, wspec,                                   # wmv, bmv
                wspec, wspec,                                   # w3,  b3
                wspec, wspec,                                   # w4,  b4
            ],
            out_specs=pl.BlockSpec((bm, d_out_p), lambda i: (i, 0)),
        ),
        compiler_params=pltpu.CompilerParams(
            dimension_semantics=("parallel",),
            vmem_limit_bytes=vmem_limit,
        ),
    )(x_p, eps_p, pk["w1"], pk["b1"], pk["wmv"], pk["bmv"],
      pk["w3"], pk["b3"], pk["w4"], pk["b4"])

    return out[:B, :d_out]


# ----------------------------------------------------------------------------
# Deterministic parameter init + pure-JAX reference
# ----------------------------------------------------------------------------
def init_params(key, d_in, hidden, latent, d_out):
    ks = jax.random.split(key, 5)
    scale = 0.1
    return {
        "w1": scale * jax.random.normal(ks[0], (d_in, hidden), jnp.float32),
        "b1": jnp.zeros((1, hidden), jnp.float32),
        "wm": scale * jax.random.normal(ks[1], (hidden, latent), jnp.float32),
        "bm": jnp.zeros((1, latent), jnp.float32),
        "wv": scale * jax.random.normal(ks[2], (hidden, latent), jnp.float32),
        "bv": jnp.zeros((1, latent), jnp.float32),
        "w3": scale * jax.random.normal(ks[3], (latent, hidden), jnp.float32),
        "b3": jnp.zeros((1, hidden), jnp.float32),
        "w4": scale * jax.random.normal(ks[4], (hidden, d_out), jnp.float32),
        "b4": jnp.zeros((1, d_out), jnp.float32),
    }


def reference_forward(x, eps, p):
    h = jnp.maximum(x @ p["w1"] + p["b1"], 0.0)
    mean = h @ p["wm"] + p["bm"]
    log_var = h @ p["wv"] + p["bv"]
    z = eps * jnp.exp(0.5 * log_var) + mean
    h2 = jnp.maximum(z @ p["w3"] + p["b3"], 0.0)
    return h2 @ p["w4"] + p["b4"]


# ----------------------------------------------------------------------------
if __name__ == "__main__":
    B, D_IN, HIDDEN, LATENT, D_OUT = 16, 32, 64, 16, 32

    key = jax.random.PRNGKey(0)
    k_x, k_eps, k_p = jax.random.split(key, 3)

    x = jax.random.normal(k_x, (B, D_IN), jnp.float32)
    # eps ~ randn_like(std); generated once outside so kernel & reference share RNG.
    # TODO(synk): could draw eps in-kernel via pltpu.prng_seed/stateful_normal; kept
    #             external for deterministic parity with the reference.
    eps = jax.random.normal(k_eps, (B, LATENT), jnp.float32)
    params = init_params(k_p, D_IN, HIDDEN, LATENT, D_OUT)

    out = domain_translator_forward(x, eps, params)
    out = jax.block_until_ready(out)

    ref = reference_forward(x, eps, params)
    assert out.shape == (B, D_OUT)
    assert jnp.allclose(out, ref, atol=2e-5, rtol=2e-5), "mismatch vs reference"

    print("KERNEL_OK")
</pallas_src>

<mosaic_0001>
module attributes {stable_mosaic.version = 11 : i64} {
  func.func @_fused_translator_kernel(%arg0: i32, %arg1: memref<16x128xf32, #tpu.memory_space<vmem>>, %arg2: memref<16x128xf32, #tpu.memory_space<vmem>>, %arg3: memref<128x128xf32, #tpu.memory_space<vmem>>, %arg4: memref<1x128xf32, #tpu.memory_space<vmem>>, %arg5: memref<128x256xf32, #tpu.memory_space<vmem>>, %arg6: memref<1x256xf32, #tpu.memory_space<vmem>>, %arg7: memref<128x128xf32, #tpu.memory_space<vmem>>, %arg8: memref<1x128xf32, #tpu.memory_space<vmem>>, %arg9: memref<128x128xf32, #tpu.memory_space<vmem>>, %arg10: memref<1x128xf32, #tpu.memory_space<vmem>>, %arg11: memref<16x128xf32, #tpu.memory_space<vmem>>) attributes {dimension_semantics = [#tpu.dimension_semantics<parallel>], iteration_bounds = array<i64: 1>, scalar_prefetch = 0 : i64, scratch_operands = 0 : i64, tpu.core_type = #tpu.core_type<tc>, window_params = [{transform_indices = @transform_0, window_bounds = array<i64: 16, 128>}, {transform_indices = @transform_1, window_bounds = array<i64: 16, 128>}, {pipeline_mode = #tpu.pipeline_mode<synchronous>, transform_indices = @transform_2, window_bounds = array<i64: 128, 128>}, {pipeline_mode = #tpu.pipeline_mode<synchronous>, transform_indices = @transform_3, window_bounds = array<i64: 1, 128>}, {pipeline_mode = #tpu.pipeline_mode<synchronous>, transform_indices = @transform_4, window_bounds = array<i64: 128, 256>}, {pipeline_mode = #tpu.pipeline_mode<synchronous>, transform_indices = @transform_5, window_bounds = array<i64: 1, 256>}, {pipeline_mode = #tpu.pipeline_mode<synchronous>, transform_indices = @transform_6, window_bounds = array<i64: 128, 128>}, {pipeline_mode = #tpu.pipeline_mode<synchronous>, transform_indices = @transform_7, window_bounds = array<i64: 1, 128>}, {pipeline_mode = #tpu.pipeline_mode<synchronous>, transform_indices = @transform_8, window_bounds = array<i64: 128, 128>}, {pipeline_mode = #tpu.pipeline_mode<synchronous>, transform_indices = @transform_9, window_bounds = array<i64: 1, 128>}, {transform_indices = @transform_10, window_bounds = array<i64: 16, 128>}]} {
    %c0 = arith.constant 0 : index
    %c0_0 = arith.constant 0 : index
    %0 = vector.load %arg1[%c0, %c0_0] : memref<16x128xf32, #tpu.memory_space<vmem>>, vector<16x128xf32>
    %c0_1 = arith.constant 0 : index
    %c0_2 = arith.constant 0 : index
    %1 = vector.load %arg3[%c0_1, %c0_2] : memref<128x128xf32, #tpu.memory_space<vmem>>, vector<128x128xf32>
    %cst = arith.constant dense<0.000000e+00> : vector<16x128xf32>
    %2 = tpu.matmul %0, %1, %cst {dimension_numbers = #tpu.dot_dimension_numbers<[1], [0], [0], [1], [0, 0, 1, 1], [], []>} : vector<16x128xf32>, vector<128x128xf32>, vector<16x128xf32> -> vector<16x128xf32>
    %c0_3 = arith.constant 0 : index
    %c0_4 = arith.constant 0 : index
    %3 = vector.load %arg4[%c0_3, %c0_4] : memref<1x128xf32, #tpu.memory_space<vmem>>, vector<1x128xf32>
    %4 = vector.broadcast %3 : vector<1x128xf32> to vector<16x128xf32>
    %5 = arith.addf %2, %4 : vector<16x128xf32>
    %cst_5 = arith.constant 0.000000e+00 : f32
    %6 = vector.broadcast %cst_5 : f32 to vector<16x128xf32>
    %7 = arith.maximumf %5, %6 : vector<16x128xf32>
    %c0_6 = arith.constant 0 : index
    %c0_7 = arith.constant 0 : index
    %8 = vector.load %arg5[%c0_6, %c0_7] : memref<128x256xf32, #tpu.memory_space<vmem>>, vector<128x256xf32>
    %cst_8 = arith.constant dense<0.000000e+00> : vector<16x256xf32>
    %9 = tpu.matmul %7, %8, %cst_8 {dimension_numbers = #tpu.dot_dimension_numbers<[1], [0], [0], [1], [0, 0, 1, 1], [], []>} : vector<16x128xf32>, vector<128x256xf32>, vector<16x256xf32> -> vector<16x256xf32>
    %c0_9 = arith.constant 0 : index
    %c0_10 = arith.constant 0 : index
    %10 = vector.load %arg6[%c0_9, %c0_10] : memref<1x256xf32, #tpu.memory_space<vmem>>, vector<1x256xf32>
    %11 = vector.broadcast %10 : vector<1x256xf32> to vector<16x256xf32>
    %12 = arith.addf %9, %11 : vector<16x256xf32>
    %13 = vector.extract_strided_slice %12 {offsets = [0, 0], sizes = [16, 128], strides = [1, 1]} : vector<16x256xf32> to vector<16x128xf32>
    %14 = vector.extract_strided_slice %12 {offsets = [0, 128], sizes = [16, 128], strides = [1, 1]} : vector<16x256xf32> to vector<16x128xf32>
    %c0_11 = arith.constant 0 : index
    %c0_12 = arith.constant 0 : index
    %15 = vector.load %arg2[%c0_11, %c0_12] : memref<16x128xf32, #tpu.memory_space<vmem>>, vector<16x128xf32>
    %cst_13 = arith.constant 5.000000e-01 : f32
    %16 = vector.broadcast %cst_13 : f32 to vector<16x128xf32>
    %17 = arith.mulf %16, %14 : vector<16x128xf32>
    %18 = math.exp %17 : vector<16x128xf32>
    %19 = arith.mulf %15, %18 : vector<16x128xf32>
    %20 = arith.addf %19, %13 : vector<16x128xf32>
    %c0_14 = arith.constant 0 : index
    %c0_15 = arith.constant 0 : index
    %21 = vector.load %arg7[%c0_14, %c0_15] : memref<128x128xf32, #tpu.memory_space<vmem>>, vector<128x128xf32>
    %cst_16 = arith.constant dense<0.000000e+00> : vector<16x128xf32>
    %22 = tpu.matmul %20, %21, %cst_16 {dimension_numbers = #tpu.dot_dimension_numbers<[1], [0], [0], [1], [0, 0, 1, 1], [], []>} : vector<16x128xf32>, vector<128x128xf32>, vector<16x128xf32> -> vector<16x128xf32>
    %c0_17 = arith.constant 0 : index
    %c0_18 = arith.constant 0 : index
    %23 = vector.load %arg8[%c0_17, %c0_18] : memref<1x128xf32, #tpu.memory_space<vmem>>, vector<1x128xf32>
    %24 = vector.broadcast %23 : vector<1x128xf32> to vector<16x128xf32>
    %25 = arith.addf %22, %24 : vector<16x128xf32>
    %cst_19 = arith.constant 0.000000e+00 : f32
    %26 = vector.broadcast %cst_19 : f32 to vector<16x128xf32>
    %27 = arith.maximumf %25, %26 : vector<16x128xf32>
    %c0_20 = arith.constant 0 : index
    %c0_21 = arith.constant 0 : index
    %28 = vector.load %arg9[%c0_20, %c0_21] : memref<128x128xf32, #tpu.memory_space<vmem>>, vector<128x128xf32>
    %cst_22 = arith.constant dense<0.000000e+00> : vector<16x128xf32>
    %29 = tpu.matmul %27, %28, %cst_22 {dimension_numbers = #tpu.dot_dimension_numbers<[1], [0], [0], [1], [0, 0, 1, 1], [], []>} : vector<16x128xf32>, vector<128x128xf32>, vector<16x128xf32> -> vector<16x128xf32>
    %c0_23 = arith.constant 0 : index
    %c0_24 = arith.constant 0 : index
    %30 = vector.load %arg10[%c0_23, %c0_24] : memref<1x128xf32, #tpu.memory_space<vmem>>, vector<1x128xf32>
    %31 = vector.broadcast %30 : vector<1x128xf32> to vector<16x128xf32>
    %32 = arith.addf %29, %31 : vector<16x128xf32>
    %c0_25 = arith.constant 0 : index
    %c0_26 = arith.constant 0 : index
    %33 = vector.load %arg11[%c0_25, %c0_26] : memref<16x128xf32, #tpu.memory_space<vmem>>, vector<16x128xf32>
    tpu.vector_store %arg11[%c0_25, %c0_26], %32 {strides = array<i32>} : memref<16x128xf32, #tpu.memory_space<vmem>>, vector<16x128xf32>,
    return
  }
  func.func @transform_0(%arg0: i32) -> (i32, i32) {
    %c0_i32 = arith.constant 0 : i32
    %c0_i32_0 = arith.constant 0 : i32
    return %arg0, %c0_i32 : i32, i32
  }
  func.func @transform_1(%arg0: i32) -> (i32, i32) {
    %c0_i32 = arith.constant 0 : i32
    %c0_i32_0 = arith.constant 0 : i32
    return %arg0, %c0_i32 : i32, i32
  }
  func.func @transform_2(%arg0: i32) -> (i32, i32) {
    %c0_i32 = arith.constant 0 : i32
    %c0_i32_0 = arith.constant 0 : i32
    %c0_i32_1 = arith.constant 0 : i32
    return %c0_i32, %c0_i32_0 : i32, i32
  }
  func.func @transform_3(%arg0: i32) -> (i32, i32) {
    %c0_i32 = arith.constant 0 : i32
    %c0_i32_0 = arith.constant 0 : i32
    %c0_i32_1 = arith.constant 0 : i32
    return %c0_i32, %c0_i32_0 : i32, i32
  }
  func.func @transform_4(%arg0: i32) -> (i32, i32) {
    %c0_i32 = arith.constant 0 : i32
    %c0_i32_0 = arith.constant 0 : i32
    %c0_i32_1 = arith.constant 0 : i32
    return %c0_i32, %c0_i32_0 : i32, i32
  }
  func.func @transform_5(%arg0: i32) -> (i32, i32) {
    %c0_i32 = arith.constant 0 : i32
    %c0_i32_0 = arith.constant 0 : i32
    %c0_i32_1 = arith.constant 0 : i32
    return %c0_i32, %c0_i32_0 : i32, i32
  }
  func.func @transform_6(%arg0: i32) -> (i32, i32) {
    %c0_i32 = arith.constant 0 : i32
    %c0_i32_0 = arith.constant 0 : i32
    %c0_i32_1 = arith.constant 0 : i32
    return %c0_i32, %c0_i32_0 : i32, i32
  }
  func.func @transform_7(%arg0: i32) -> (i32, i32) {
    %c0_i32 = arith.constant 0 : i32
    %c0_i32_0 = arith.constant 0 : i32
    %c0_i32_1 = arith.constant 0 : i32
    return %c0_i32, %c0_i32_0 : i32, i32
  }
  func.func @transform_8(%arg0: i32) -> (i32, i32) {
    %c0_i32 = arith.constant 0 : i32
    %c0_i32_0 = arith.constant 0 : i32
    %c0_i32_1 = arith.constant 0 : i32
    return %c0_i32, %c0_i32_0 : i32, i32
  }
  func.func @transform_9(%arg0: i32) -> (i32, i32) {
    %c0_i32 = arith.constant 0 : i32
    %c0_i32_0 = arith.constant 0 : i32
    %c0_i32_1 = arith.constant 0 : i32
    return %c0_i32, %c0_i32_0 : i32, i32
  }
  func.func @transform_10(%arg0: i32) -> (i32, i32) {
    %c0_i32 = arith.constant 0 : i32
    %c0_i32_0 = arith.constant 0 : i32
    return %arg0, %c0_i32 : i32, i32
  }
}

</mosaic_0001>

<llo_original>
// kernel: domain_translator_forward.1
$region0: #{domain_translator_forward.1}
  #allocation0 [shape = 'u32[]', space=smem, size = 0x4, offset = 0x4, fixed_abs, tag = 'smem constant byte address 0x4 - core index']
  #allocation1 [shape = 'u32[144,128]{1,0:T(1,128)}', space=vmem, size = 0x12000, scoped, tag = 'internal scratch']
  %s0 = inlined_call_operand.vmem [shape: f32[16,128], index: 0, kind: input, shape index: {}]
  %s1 = inlined_call_operand.vmem [shape: f32[16,128], index: 1, kind: input, shape index: {}]
  %s2 = inlined_call_operand.vmem [shape: f32[128,128], index: 2, kind: input, shape index: {}]
  %s3 = inlined_call_operand.vmem [shape: f32[1,128], index: 3, kind: input, shape index: {}]
  %s4 = inlined_call_operand.vmem [shape: f32[128,256], index: 4, kind: input, shape index: {}]
  %s5 = inlined_call_operand.vmem [shape: f32[1,256], index: 5, kind: input, shape index: {}]
  %s6 = inlined_call_operand.vmem [shape: f32[128,128], index: 6, kind: input, shape index: {}]
  %s7 = inlined_call_operand.vmem [shape: f32[1,128], index: 7, kind: input, shape index: {}]
  %s8 = inlined_call_operand.vmem [shape: f32[128,128], index: 8, kind: input, shape index: {}]
  %s9 = inlined_call_operand.vmem [shape: f32[1,128], index: 9, kind: input, shape index: {}]
  %s10 = inlined_call_operand.hbm [shape: f32[16,128], index: 10, kind: output, shape index: {}]
  %s11 = sld [smem:[#allocation0]]
  $region50: #{domain_translator_forward.1} parent=0
    _
  %s13 = ssub.s32 1, %s11
  %s14 = scalar_select 0, %s13, %s11
  $region1: #{domain_translator_forward.1} parent=0
    #allocation2 [shape = 'u8[8192]{0}', space=vmem, size = 0x2000, scoped, tag = 'output window, operand 0, single buffered']
    #allocation3 [shape = 's32[1]{0}', space=sflag, size = 0x4, scoped, tag = 'scoped memory for domain_translator_forward.1']
    %15 = vsyncpa [#allocation3], 0
    // Predicated region
    $region2: #{domain_translator_forward.1} parent=1 // pred_check
      _
    $region3: #{domain_translator_forward.1} parent=1 // pred_check_branch
      %17 = sbr.rel (0) target = $region5
    $region4: #{domain_translator_forward.1} parent=1 // pred_region
      _
    $region5: #{domain_translator_forward.1} parent=1 // pred_fallthru
      _
    // Predicated region
    $region6: #{domain_translator_forward.1} parent=1 // pred_check
      _
    $region7: #{domain_translator_forward.1} parent=1 // pred_check_branch
      %19 = sbr.rel (0) target = $region9
    $region8: #{domain_translator_forward.1} parent=1 // pred_region
      _
    $region9: #{domain_translator_forward.1} parent=1 // pred_fallthru
      _
    // Predicated region
    $region10: #{domain_translator_forward.1} parent=1 // pred_check
      _
    $region11: #{domain_translator_forward.1} parent=1 // pred_check_branch
      %21 = sbr.rel (0) target = $region13
    $region12: #{domain_translator_forward.1} parent=1 // pred_region
      _
    $region13: #{domain_translator_forward.1} parent=1 // pred_fallthru
      _
    // Predicated region
    $region14: #{domain_translator_forward.1} parent=1 // pred_check
      _
    $region15: #{domain_translator_forward.1} parent=1 // pred_check_branch
      %23 = sbr.rel (0) target = $region17
    $region16: #{domain_translator_forward.1} parent=1 // pred_region
      _
    $region17: #{domain_translator_forward.1} parent=1 // pred_fallthru
      _
    // Predicated region
    $region18: #{domain_translator_forward.1} parent=1 // pred_check
      _
    $region19: #{domain_translator_forward.1} parent=1 // pred_check_branch
      %25 = sbr.rel (0) target = $region21
    $region20: #{domain_translator_forward.1} parent=1 // pred_region
      _
    $region21: #{domain_translator_forward.1} parent=1 // pred_fallthru
      _
    // Predicated region
    $region22: #{domain_translator_forward.1} parent=1 // pred_check
      _
    $region23: #{domain_translator_forward.1} parent=1 // pred_check_branch
      %27 = sbr.rel (0) target = $region25
    $region24: #{domain_translator_forward.1} parent=1 // pred_region
      _
    $region25: #{domain_translator_forward.1} parent=1 // pred_fallthru
      _
    // Predicated region
    $region26: #{domain_translator_forward.1} parent=1 // pred_check
      _
    $region27: #{domain_translator_forward.1} parent=1 // pred_check_branch
      %29 = sbr.rel (0) target = $region29
    $region28: #{domain_translator_forward.1} parent=1 // pred_region
      _
    $region29: #{domain_translator_forward.1} parent=1 // pred_fallthru
      _
    // Predicated region
    $region30: #{domain_translator_forward.1} parent=1 // pred_check
      _
    $region31: #{domain_translator_forward.1} parent=1 // pred_check_branch
      %31 = sbr.rel (0) target = $region33
    $region32: #{domain_translator_forward.1} parent=1 // pred_region
      _
    $region33: #{domain_translator_forward.1} parent=1 // pred_fallthru
      _
    // Predicated region
    $region34: #{domain_translator_forward.1} parent=1 // pred_check
      _
    $region35: #{domain_translator_forward.1} parent=1 // pred_check_branch
      %33 = sbr.rel (0) target = $region37
    $region36: #{domain_translator_forward.1} parent=1 // pred_region
      _
    $region37: #{domain_translator_forward.1} parent=1 // pred_fallthru
      _
    // Predicated region
    $region38: #{domain_translator_forward.1} parent=1 // pred_check
      _
    $region39: #{domain_translator_forward.1} parent=1 // pred_check_branch
      %35 = sbr.rel (0) target = $region41
    $region40: #{domain_translator_forward.1} parent=1 // pred_region
      _
    $region41: #{domain_translator_forward.1} parent=1 // pred_fallthru
      _
    %v36 = vld [vmem:[%s0] sm:$0xff]
    %v37 = vld [vmem:[%s0 + $0x8] sm:$0xff]
    %v38 = vld [vmem:[%s2] sm:$0xff]
    %v39 = vld [vmem:[%s2 + $0x8] sm:$0xff]
    %v40 = vld [vmem:[%s2 + $0x10] sm:$0xff]
    %v41 = vld [vmem:[%s2 + $0x18] sm:$0xff]
    %v42 = vld [vmem:[%s2 + $0x20] sm:$0xff]
    %v43 = vld [vmem:[%s2 + $0x28] sm:$0xff]
    %v44 = vld [vmem:[%s2 + $0x30] sm:$0xff]
    %v45 = vld [vmem:[%s2 + $0x38] sm:$0xff]
    %v46 = vld [vmem:[%s2 + $0x40] sm:$0xff]
    %v47 = vld [vmem:[%s2 + $0x48] sm:$0xff]
    %v48 = vld [vmem:[%s2 + $0x50] sm:$0xff]
    %v49 = vld [vmem:[%s2 + $0x58] sm:$0xff]
    %v50 = vld [vmem:[%s2 + $0x60] sm:$0xff]
    %v51 = vld [vmem:[%s2 + $0x68] sm:$0xff]
    %v52 = vld [vmem:[%s2 + $0x70] sm:$0xff]
    %v53 = vld [vmem:[%s2 + $0x78] sm:$0xff]
    %v54 = vld [vmem:[%s3] sm:$0x1]
    %v56 = vlaneseq
    %v57 = vshrl.u32 %v56, 7
    %v58 = vsub.s32 0, %v57
    %v59 = vrot.slane %v54, %v58
    %61 = vmatprep.subr.mxu0 0.0
    %62 = vmatpush1.msra.mxu0 %v38
    %63 = vmatprep.subr.mxu0 0.0
    %64 = vmatpush1.msra.mxu0 %v39
    %65 = vmatprep.subr.mxu0 0.0
    %66 = vmatpush1.msra.mxu0 %v40
    %67 = vmatprep.subr.mxu0 0.0
    %68 = vmatpush1.msra.mxu0 %v41
    %69 = vmatprep.subr.mxu0 0.0
    %70 = vmatpush1.msra.mxu0 %v42
    %71 = vmatprep.subr.mxu0 0.0
    %72 = vmatpush1.msra.mxu0 %v43
    %73 = vmatprep.subr.mxu0 0.0
    %74 = vmatpush1.msra.mxu0 %v44
    %75 = vmatprep.subr.mxu0 0.0
    %76 = vmatpush1.msra.mxu0 %v45
    %77 = vmatprep.subr.mxu0 0.0
    %78 = vmatpush1.msra.mxu0 %v46
    %79 = vmatprep.subr.mxu0 0.0
    %80 = vmatpush1.msra.mxu0 %v47
    %81 = vmatprep.subr.mxu0 0.0
    %82 = vmatpush1.msra.mxu0 %v48
    %83 = vmatprep.subr.mxu0 0.0
    %84 = vmatpush1.msra.mxu0 %v49
    %85 = vmatprep.subr.mxu0 0.0
    %86 = vmatpush1.msra.mxu0 %v50
    %87 = vmatprep.subr.mxu0 0.0
    %88 = vmatpush1.msra.mxu0 %v51
    %89 = vmatprep.subr.mxu0 0.0
    %90 = vmatpush1.msra.mxu0 %v52
    %91 = vmatprep.subr.mxu0 0.0
    %92 = vmatpush1.msra.mxu0 %v53
    %93 = vmatprep.subr.mxu0 0.0
    %94 = vmatpush1.msra.mxu0 0.0
    %95 = vmatprep.subr.mxu0 0.0
    %96 = vmatpush1.msra.mxu0 0.0
    %97 = vmatprep.subr.mxu0 0.0
    %98 = vmatpush1.msra.mxu0 0.0
    %99 = vmatprep.subr.mxu0 0.0
    %100 = vmatpush1.msra.mxu0 0.0
    %101 = vmatprep.subr.mxu0 0.0
    %102 = vmatpush1.msra.mxu0 0.0
    %103 = vmatprep.subr.mxu0 0.0
    %104 = vmatpush1.msra.mxu0 0.0
    %105 = vmatprep.subr.mxu0 0.0
    %106 = vmatpush1.msra.mxu0 0.0
    %107 = vmatprep.subr.mxu0 0.0
    %108 = vmatpush1.msra.mxu0 0.0
    %109 = vmatprep.subr.mxu0 0.0
    %110 = vmatpush1.msra.mxu0 0.0
    %111 = vmatprep.subr.mxu0 0.0
    %112 = vmatpush1.msra.mxu0 0.0
    %113 = vmatprep.subr.mxu0 0.0
    %114 = vmatpush1.msra.mxu0 0.0
    %115 = vmatprep.subr.mxu0 0.0
    %116 = vmatpush1.msra.mxu0 0.0
    %117 = vmatprep.subr.mxu0 0.0
    %118 = vmatpush1.msra.mxu0 0.0
    %119 = vmatprep.subr.mxu0 0.0
    %120 = vmatpush1.msra.mxu0 0.0
    %121 = vmatprep.subr.mxu0 0.0
    %122 = vmatpush1.msra.mxu0 0.0
    %123 = vmatprep.subr.mxu0 0.0
    %124 = vmatpush1.msra.mxu0 0.0
    %125 = vmatprep.mubr.f32.mxu0 0.0
    %126 = vmatmul.mubr.f32.gmra.mrb[0].mxu0 %v36
    %v127 = vpop.f32.mrb[0].mxu0
    %v128 = vadd.f32 %v59, %v127
    %v129 = vpop.f32.mrb[0].mxu0
    %130 = vmatprep.mubr.f32.mxu0 0.0
    %131 = vmatmul.mubr.f32.gmra.mrb[0].mxu0 %v37
    %v132 = vpop.f32.mrb[0].mxu0
    %v133 = vadd.f32 %v59, %v132
    %v134 = vpop.f32.mrb[0].mxu0
    %135 = vdwg.mxu0
    %v136 = vmax.f32 %v128, 0.0
    %v137 = vmax.f32 %v133, 0.0
    %v138 = vld [vmem:[%s4] sm:$0xff]
    %v139 = vld [vmem:[%s4 + $0x8] sm:$0xff]
    %v140 = vld [vmem:[%s4 + $0x10] sm:$0xff]
    %v141 = vld [vmem:[%s4 + $0x18] sm:$0xff]
    %v142 = vld [vmem:[%s4 + $0x20] sm:$0xff]
    %v143 = vld [vmem:[%s4 + $0x28] sm:$0xff]
    %v144 = vld [vmem:[%s4 + $0x30] sm:$0xff]
    %v145 = vld [vmem:[%s4 + $0x38] sm:$0xff]
    %v146 = vld [vmem:[%s4 + $0x40] sm:$0xff]
    %v147 = vld [vmem:[%s4 + $0x48] sm:$0xff]
    %v148 = vld [vmem:[%s4 + $0x50] sm:$0xff]
    %v149 = vld [vmem:[%s4 + $0x58] sm:$0xff]
    %v150 = vld [vmem:[%s4 + $0x60] sm:$0xff]
    %v151 = vld [vmem:[%s4 + $0x68] sm:$0xff]
    %v152 = vld [vmem:[%s4 + $0x70] sm:$0xff]
    %v153 = vld [vmem:[%s4 + $0x78] sm:$0xff]
    %v154 = vld [vmem:[%s4 + $0x80] sm:$0xff]
    %v155 = vld [vmem:[%s4 + $0x88] sm:$0xff]
    %v156 = vld [vmem:[%s4 + $0x90] sm:$0xff]
    %v157 = vld [vmem:[%s4 + $0x98] sm:$0xff]
    %v158 = vld [vmem:[%s4 + $0xa0] sm:$0xff]
    %v159 = vld [vmem:[%s4 + $0xa8] sm:$0xff]
    %v160 = vld [vmem:[%s4 + $0xb0] sm:$0xff]
    %v161 = vld [vmem:[%s4 + $0xb8] sm:$0xff]
    %v162 = vld [vmem:[%s4 + $0xc0] sm:$0xff]
    %v163 = vld [vmem:[%s4 + $0xc8] sm:$0xff]
    %v164 = vld [vmem:[%s4 + $0xd0] sm:$0xff]
    %v165 = vld [vmem:[%s4 + $0xd8] sm:$0xff]
    %v166 = vld [vmem:[%s4 + $0xe0] sm:$0xff]
    %v167 = vld [vmem:[%s4 + $0xe8] sm:$0xff]
    %v168 = vld [vmem:[%s4 + $0xf0] sm:$0xff]
    %v169 = vld [vmem:[%s4 + $0xf8] sm:$0xff]
    %v170 = vld [vmem:[%s5] sm:$0x3]
    %v172 = vlaneseq
    %v173 = vshrl.u32 %v172, 7
    %v174 = vsub.s32 0, %v173
    %v175 = vrot.slane %v170, %v174
    %v176 = vlaneseq
    %v177 = vshrl.u32 %v176, 7
    %v178 = vsub.s32 1, %v177
    %v179 = vrot.slane %v170, %v178
    %182 = vmatprep.subr.mxu0 %v139
    %183 = vmatpush1.msra.mxu0 %v138
    %184 = vmatprep.subr.mxu0 %v141
    %185 = vmatpush1.msra.mxu0 %v140
    %186 = vmatprep.subr.mxu0 %v143
    %187 = vmatpush1.msra.mxu0 %v142
    %188 = vmatprep.subr.mxu0 %v145
    %189 = vmatpush1.msra.mxu0 %v144
    %190 = vmatprep.subr.mxu0 %v147
    %191 = vmatpush1.msra.mxu0 %v146
    %192 = vmatprep.subr.mxu0 %v149
    %193 = vmatpush1.msra.mxu0 %v148
    %194 = vmatprep.subr.mxu0 %v151
    %195 = vmatpush1.msra.mxu0 %v150
    %196 = vmatprep.subr.mxu0 %v153
    %197 = vmatpush1.msra.mxu0 %v152
    %198 = vmatprep.subr.mxu0 %v155
    %199 = vmatpush1.msra.mxu0 %v154
    %200 = vmatprep.subr.mxu0 %v157
    %201 = vmatpush1.msra.mxu0 %v156
    %202 = vmatprep.subr.mxu0 %v159
    %203 = vmatpush1.msra.mxu0 %v158
    %204 = vmatprep.subr.mxu0 %v161
    %205 = vmatpush1.msra.mxu0 %v160
    %206 = vmatprep.subr.mxu0 %v163
    %207 = vmatpush1.msra.mxu0 %v162
    %208 = vmatprep.subr.mxu0 %v165
    %209 = vmatpush1.msra.mxu0 %v164
    %210 = vmatprep.subr.mxu0 %v167
    %211 = vmatpush1.msra.mxu0 %v166
    %212 = vmatprep.subr.mxu0 %v169
    %213 = vmatpush1.msra.mxu0 %v168
    %214 = vmatprep.subr.mxu0 0.0
    %215 = vmatpush1.msra.mxu0 0.0
    %216 = vmatprep.subr.mxu0 0.0
    %217 = vmatpush1.msra.mxu0 0.0
    %218 = vmatprep.subr.mxu0 0.0
    %219 = vmatpush1.msra.mxu0 0.0
    %220 = vmatprep.subr.mxu0 0.0
    %221 = vmatpush1.msra.mxu0 0.0
    %222 = vmatprep.subr.mxu0 0.0
    %223 = vmatpush1.msra.mxu0 0.0
    %224 = vmatprep.subr.mxu0 0.0
    %225 = vmatpush1.msra.mxu0 0.0
    %226 = vmatprep.subr.mxu0 0.0
    %227 = vmatpush1.msra.mxu0 0.0
    %228 = vmatprep.subr.mxu0 0.0
    %229 = vmatpush1.msra.mxu0 0.0
    %230 = vmatprep.subr.mxu0 0.0
    %231 = vmatpush1.msra.mxu0 0.0
    %232 = vmatprep.subr.mxu0 0.0
    %233 = vmatpush1.msra.mxu0 0.0
    %234 = vmatprep.subr.mxu0 0.0
    %235 = vmatpush1.msra.mxu0 0.0
    %236 = vmatprep.subr.mxu0 0.0
    %237 = vmatpush1.msra.mxu0 0.0
    %238 = vmatprep.subr.mxu0 0.0
    %239 = vmatpush1.msra.mxu0 0.0
    %240 = vmatprep.subr.mxu0 0.0
    %241 = vmatpush1.msra.mxu0 0.0
    %242 = vmatprep.subr.mxu0 0.0
    %243 = vmatpush1.msra.mxu0 0.0
    %244 = vmatprep.subr.mxu0 0.0
    %245 = vmatpush1.msra.mxu0 0.0
    %246 = vmatprep.mubr.f32.mxu0 0.0
    %247 = vmatmul.mubr.f32.gmra.mrb[0].mxu0 %v136
    %v248 = vpop.f32.mrb[0].mxu0
    %v249 = vadd.f32 %v175, %v248
    %v250 = vpop.f32.mrb[0].mxu0
    %v251 = vadd.f32 %v179, %v250
    %252 = vmatprep.mubr.f32.mxu0 0.0
    %253 = vmatmul.mubr.f32.gmra.mrb[0].mxu0 %v137
    %v254 = vpop.f32.mrb[0].mxu0
    %v255 = vadd.f32 %v175, %v254
    %v256 = vpop.f32.mrb[0].mxu0
    %v257 = vadd.f32 %v179, %v256
    %258 = vdwg.mxu0
    %v259 = vld [vmem:[%s1] sm:$0xff]
    %v260 = vld [vmem:[%s1 + $0x8] sm:$0xff]
    %v261 = vmul.f32 %v251, 0.5
    %v262 = vmul.f32 %v257, 0.5
    %v263 = vmul.f32 %v261, 1.442695
    %v264 = vpow.pop %v263
    %v265 = vmul.f32 %v262, 1.442695
    %v266 = vpow.pop %v265
    %v267 = vmul.f32 %v259, %v264
    %v268 = vmul.f32 %v260, %v266
    %v269 = vadd.f32 %v267, %v249
    %v270 = vadd.f32 %v268, %v255
    %v271 = vld [vmem:[%s6] sm:$0xff]
    %v272 = vld [vmem:[%s6 + $0x8] sm:$0xff]
    %v273 = vld [vmem:[%s6 + $0x10] sm:$0xff]
    %v274 = vld [vmem:[%s6 + $0x18] sm:$0xff]
    %v275 = vld [vmem:[%s6 + $0x20] sm:$0xff]
    %v276 = vld [vmem:[%s6 + $0x28] sm:$0xff]
    %v277 = vld [vmem:[%s6 + $0x30] sm:$0xff]
    %v278 = vld [vmem:[%s6 + $0x38] sm:$0xff]
    %v279 = vld [vmem:[%s6 + $0x40] sm:$0xff]
    %v280 = vld [vmem:[%s6 + $0x48] sm:$0xff]
    %v281 = vld [vmem:[%s6 + $0x50] sm:$0xff]
    %v282 = vld [vmem:[%s6 + $0x58] sm:$0xff]
    %v283 = vld [vmem:[%s6 + $0x60] sm:$0xff]
    %v284 = vld [vmem:[%s6 + $0x68] sm:$0xff]
    %v285 = vld [vmem:[%s6 + $0x70] sm:$0xff]
    %v286 = vld [vmem:[%s6 + $0x78] sm:$0xff]
    %v287 = vld [vmem:[%s7] sm:$0x1]
    %v289 = vlaneseq
    %v290 = vshrl.u32 %v289, 7
    %v291 = vsub.s32 0, %v290
    %v292 = vrot.slane %v287, %v291
    %294 = vmatprep.subr.mxu0 0.0
    %295 = vmatpush1.msra.mxu0 %v271
    %296 = vmatprep.subr.mxu0 0.0
    %297 = vmatpush1.msra.mxu0 %v272
    %298 = vmatprep.subr.mxu0 0.0
    %299 = vmatpush1.msra.mxu0 %v273
    %300 = vmatprep.subr.mxu0 0.0
    %301 = vmatpush1.msra.mxu0 %v274
    %302 = vmatprep.subr.mxu0 0.0
    %303 = vmatpush1.msra.mxu0 %v275
    %304 = vmatprep.subr.mxu0 0.0
    %305 = vmatpush1.msra.mxu0 %v276
    %306 = vmatprep.subr.mxu0 0.0
    %307 = vmatpush1.msra.mxu0 %v277
    %308 = vmatprep.subr.mxu0 0.0
    %309 = vmatpush1.msra.mxu0 %v278
    %310 = vmatprep.subr.mxu0 0.0
    %311 = vmatpush1.msra.mxu0 %v279
    %312 = vmatprep.subr.mxu0 0.0
    %313 = vmatpush1.msra.mxu0 %v280
    %314 = vmatprep.subr.mxu0 0.0
    %315 = vmatpush1.msra.mxu0 %v281
    %316 = vmatprep.subr.mxu0 0.0
    %317 = vmatpush1.msra.mxu0 %v282
    %318 = vmatprep.subr.mxu0 0.0
    %319 = vmatpush1.msra.mxu0 %v283
    %320 = vmatprep.subr.mxu0 0.0
    %321 = vmatpush1.msra.mxu0 %v284
    %322 = vmatprep.subr.mxu0 0.0
    %323 = vmatpush1.msra.mxu0 %v285
    %324 = vmatprep.subr.mxu0 0.0
    %325 = vmatpush1.msra.mxu0 %v286
    %326 = vmatprep.subr.mxu0 0.0
    %327 = vmatpush1.msra.mxu0 0.0
    %328 = vmatprep.subr.mxu0 0.0
    %329 = vmatpush1.msra.mxu0 0.0
    %330 = vmatprep.subr.mxu0 0.0
    %331 = vmatpush1.msra.mxu0 0.0
    %332 = vmatprep.subr.mxu0 0.0
    %333 = vmatpush1.msra.mxu0 0.0
    %334 = vmatprep.subr.mxu0 0.0
    %335 = vmatpush1.msra.mxu0 0.0
    %336 = vmatprep.subr.mxu0 0.0
    %337 = vmatpush1.msra.mxu0 0.0
    %338 = vmatprep.subr.mxu0 0.0
    %339 = vmatpush1.msra.mxu0 0.0
    %340 = vmatprep.subr.mxu0 0.0
    %341 = vmatpush1.msra.mxu0 0.0
    %342 = vmatprep.subr.mxu0 0.0
    %343 = vmatpush1.msra.mxu0 0.0
    %344 = vmatprep.subr.mxu0 0.0
    %345 = vmatpush1.msra.mxu0 0.0
    %346 = vmatprep.subr.mxu0 0.0
    %347 = vmatpush1.msra.mxu0 0.0
    %348 = vmatprep.subr.mxu0 0.0
    %349 = vmatpush1.msra.mxu0 0.0
    %350 = vmatprep.subr.mxu0 0.0
    %351 = vmatpush1.msra.mxu0 0.0
    %352 = vmatprep.subr.mxu0 0.0
    %353 = vmatpush1.msra.mxu0 0.0
    %354 = vmatprep.subr.mxu0 0.0
    %355 = vmatpush1.msra.mxu0 0.0
    %356 = vmatprep.subr.mxu0 0.0
    %357 = vmatpush1.msra.mxu0 0.0
    %358 = vmatprep.mubr.f32.mxu0 0.0
    %359 = vmatmul.mubr.f32.gmra.mrb[0].mxu0 %v269
    %v360 = vpop.f32.mrb[0].mxu0
    %v361 = vadd.f32 %v292, %v360
    %v362 = vpop.f32.mrb[0].mxu0
    %363 = vmatprep.mubr.f32.mxu0 0.0
    %364 = vmatmul.mubr.f32.gmra.mrb[0].mxu0 %v270
    %v365 = vpop.f32.mrb[0].mxu0
    %v366 = vadd.f32 %v292, %v365
    %v367 = vpop.f32.mrb[0].mxu0
    %368 = vdwg.mxu0
    %v369 = vmax.f32 %v361, 0.0
    %v370 = vmax.f32 %v366, 0.0
    %v371 = vld [vmem:[%s8] sm:$0xff]
    %v372 = vld [vmem:[%s8 + $0x8] sm:$0xff]
    %v373 = vld [vmem:[%s8 + $0x10] sm:$0xff]
    %v374 = vld [vmem:[%s8 + $0x18] sm:$0xff]
    %v375 = vld [vmem:[%s8 + $0x20] sm:$0xff]
    %v376 = vld [vmem:[%s8 + $0x28] sm:$0xff]
    %v377 = vld [vmem:[%s8 + $0x30] sm:$0xff]
    %v378 = vld [vmem:[%s8 + $0x38] sm:$0xff]
    %v379 = vld [vmem:[%s8 + $0x40] sm:$0xff]
    %v380 = vld [vmem:[%s8 + $0x48] sm:$0xff]
    %v381 = vld [vmem:[%s8 + $0x50] sm:$0xff]
    %v382 = vld [vmem:[%s8 + $0x58] sm:$0xff]
    %v383 = vld [vmem:[%s8 + $0x60] sm:$0xff]
    %v384 = vld [vmem:[%s8 + $0x68] sm:$0xff]
    %v385 = vld [vmem:[%s8 + $0x70] sm:$0xff]
    %v386 = vld [vmem:[%s8 + $0x78] sm:$0xff]
    %v387 = vld [vmem:[%s9] sm:$0x1]
    %v389 = vlaneseq
    %v390 = vshrl.u32 %v389, 7
    %v391 = vsub.s32 0, %v390
    %v392 = vrot.slane %v387, %v391
    %394 = vmatprep.subr.mxu0 0.0
    %395 = vmatpush1.msra.mxu0 %v371
    %396 = vmatprep.subr.mxu0 0.0
    %397 = vmatpush1.msra.mxu0 %v372
    %398 = vmatprep.subr.mxu0 0.0
    %399 = vmatpush1.msra.mxu0 %v373
    %400 = vmatprep.subr.mxu0 0.0
    %401 = vmatpush1.msra.mxu0 %v374
    %402 = vmatprep.subr.mxu0 0.0
    %403 = vmatpush1.msra.mxu0 %v375
    %404 = vmatprep.subr.mxu0 0.0
    %405 = vmatpush1.msra.mxu0 %v376
    %406 = vmatprep.subr.mxu0 0.0
    %407 = vmatpush1.msra.mxu0 %v377
    %408 = vmatprep.subr.mxu0 0.0
    %409 = vmatpush1.msra.mxu0 %v378
    %410 = vmatprep.subr.mxu0 0.0
    %411 = vmatpush1.msra.mxu0 %v379
    %412 = vmatprep.subr.mxu0 0.0
    %413 = vmatpush1.msra.mxu0 %v380
    %414 = vmatprep.subr.mxu0 0.0
    %415 = vmatpush1.msra.mxu0 %v381
    %416 = vmatprep.subr.mxu0 0.0
    %417 = vmatpush1.msra.mxu0 %v382
    %418 = vmatprep.subr.mxu0 0.0
    %419 = vmatpush1.msra.mxu0 %v383
    %420 = vmatprep.subr.mxu0 0.0
    %421 = vmatpush1.msra.mxu0 %v384
    %422 = vmatprep.subr.mxu0 0.0
    %423 = vmatpush1.msra.mxu0 %v385
    %424 = vmatprep.subr.mxu0 0.0
    %425 = vmatpush1.msra.mxu0 %v386
    %426 = vmatprep.subr.mxu0 0.0
    %427 = vmatpush1.msra.mxu0 0.0
    %428 = vmatprep.subr.mxu0 0.0
    %429 = vmatpush1.msra.mxu0 0.0
    %430 = vmatprep.subr.mxu0 0.0
    %431 = vmatpush1.msra.mxu0 0.0
    %432 = vmatprep.subr.mxu0 0.0
    %433 = vmatpush1.msra.mxu0 0.0
    %434 = vmatprep.subr.mxu0 0.0
    %435 = vmatpush1.msra.mxu0 0.0
    %436 = vmatprep.subr.mxu0 0.0
    %437 = vmatpush1.msra.mxu0 0.0
    %438 = vmatprep.subr.mxu0 0.0
    %439 = vmatpush1.msra.mxu0 0.0
    %440 = vmatprep.subr.mxu0 0.0
    %441 = vmatpush1.msra.mxu0 0.0
    %442 = vmatprep.subr.mxu0 0.0
    %443 = vmatpush1.msra.mxu0 0.0
    %444 = vmatprep.subr.mxu0 0.0
    %445 = vmatpush1.msra.mxu0 0.0
    %446 = vmatprep.subr.mxu0 0.0
    %447 = vmatpush1.msra.mxu0 0.0
    %448 = vmatprep.subr.mxu0 0.0
    %449 = vmatpush1.msra.mxu0 0.0
    %450 = vmatprep.subr.mxu0 0.0
    %451 = vmatpush1.msra.mxu0 0.0
    %452 = vmatprep.subr.mxu0 0.0
    %453 = vmatpush1.msra.mxu0 0.0
    %454 = vmatprep.subr.mxu0 0.0
    %455 = vmatpush1.msra.mxu0 0.0
    %456 = vmatprep.subr.mxu0 0.0
    %457 = vmatpush1.msra.mxu0 0.0
    %458 = vmatprep.mubr.f32.mxu0 0.0
    %459 = vmatmul.mubr.f32.gmra.mrb[0].mxu0 %v369
    %v460 = vpop.f32.mrb[0].mxu0
    %v461 = vadd.f32 %v392, %v460
    %v462 = vpop.f32.mrb[0].mxu0
    %463 = vmatprep.mubr.f32.mxu0 0.0
    %464 = vmatmul.mubr.f32.gmra.mrb[0].mxu0 %v370
    %v465 = vpop.f32.mrb[0].mxu0
    %v466 = vadd.f32 %v392, %v465
    %v467 = vpop.f32.mrb[0].mxu0
    %468 = vdwg.mxu0
    %469 = vst [vmem:[#allocation2] sm:$0xff] %v461
    %470 = vst [vmem:[#allocation2 + $0x8] sm:$0xff] %v466
    // Predicated region
    $region42: #{domain_translator_forward.1} parent=1 // pred_check
      _
    $region43: #{domain_translator_forward.1} parent=1 // pred_check_branch
      %472 = sbr.rel (0) target = $region45
    $region44: #{domain_translator_forward.1} parent=1 // pred_region
      %s474 = ssub.s32 256, 256
      %475 = vsyncadd [#allocation3], %s474
      %s476 = sshll.u32 [#allocation2], 4
      %s477 = int_to_ptr.vmem [resolvable:$true] %s476
      %482 = dma.vmem_to_hbm [thread:$0]  %s477, 256, %s10, [#allocation3], 128, 128, 8
    $region45: #{domain_translator_forward.1} parent=1 // pred_fallthru
      _
    // Predicated region
    $region46: #{domain_translator_forward.1} parent=1 // pred_check
      _
    $region47: #{domain_translator_forward.1} parent=1 // pred_check_branch
      %484 = sbr.rel (0) target = $region49
    $region48: #{domain_translator_forward.1} parent=1 // pred_region
      %485 = dma.done [#allocation3], 256
    $region49: #{domain_translator_forward.1} parent=1 // pred_fallthru
      _
    %486 = vsyncpa [#allocation3], 1

</llo_original>
